<compile_context>
chip_gen: v7x
topology: tpu7x:2x2x1
jax: 0.10.0
libtpu: 0.0.40
codegen_flags: <defaults>
</compile_context>

<pallas_src>
import jax
import jax.numpy as jnp
from jax.experimental import pallas as pl
from jax.experimental.pallas import tpu as pltpu

BN_EPS = 1e-5


def _round_up(x, m):
    return ((x + m - 1) // m) * m


def _make_stage1_kernel(b_actual, b_pad, tile_b):
    """Linear1 + ReLU per batch tile; accumulate BN sum / sum-of-squares."""
    needs_mask = (b_pad != b_actual)

    def kernel(x_ref, w1_ref, b1_ref, h1_ref, sum_ref, ssq_ref):
        i = pl.program_id(0)

        @pl.when(i == 0)
        def _():
            sum_ref[...] = jnp.zeros_like(sum_ref)
            ssq_ref[...] = jnp.zeros_like(ssq_ref)

        # (TB, IN) bf16 @ (IN, H) bf16 -> f32 accumulation on the MXU.
        h1 = jnp.dot(x_ref[...], w1_ref[...],
                     preferred_element_type=jnp.float32) + b1_ref[...]
        h1 = jnp.maximum(h1, 0.0)
        h1_ref[...] = h1

        if needs_mask:  # padded batch rows must not pollute the BN statistics
            row = i * tile_b + jax.lax.broadcasted_iota(jnp.int32, h1.shape, 0)
            h1 = jnp.where(row < b_actual, h1, 0.0)
        sum_ref[...] += jnp.sum(h1, axis=0, keepdims=True)
        ssq_ref[...] += jnp.sum(h1 * h1, axis=0, keepdims=True)

    return kernel


def _make_stage2_kernel(b_actual):
    """BatchNorm (global stats) -> Linear2 + ReLU -> Linear(H,1) + Sigmoid."""
    inv_n = 1.0 / float(b_actual)

    def kernel(h1_ref, sum_ref, ssq_ref, gamma_ref, beta_ref,
               w2_ref, b2_ref, w3_ref, b3_ref, out_ref):
        h1 = h1_ref[...]                                   # (TB, H) f32
        mean = sum_ref[...] * inv_n                        # (1, H)
        var = ssq_ref[...] * inv_n - mean * mean           # E[x^2] - mean^2
        inv_std = jax.lax.rsqrt(var + BN_EPS)
        scale = gamma_ref[...] * inv_std                   # fold BN to a*x + b
        shift = beta_ref[...] - mean * scale
        h_bn = h1 * scale + shift                          # (TB, H) f32

        h2 = jnp.dot(h_bn.astype(jnp.bfloat16), w2_ref[...],
                     preferred_element_type=jnp.float32) + b2_ref[...]
        h2 = jnp.maximum(h2, 0.0)                          # (TB, H) f32

        # N=1 head as VPU multiply + XLU lane-reduction (w3 passed as a row).
        logit = jnp.sum(h2 * w3_ref[...], axis=-1, keepdims=True) + b3_ref[...]
        out_ref[...] = jax.nn.sigmoid(logit)               # (TB, 1)

    return kernel


def discriminator_forward(x, params, *, tile_batch=None):
    B, IN = x.shape
    H = params["w1"].shape[1]

    # Batch tile: multiple of 8 sublanes; up to 256 rows to fill the MXU.
    if tile_batch is None:
        tb = 256 if B >= 256 else _round_up(B, 8)
    else:
        tb = _round_up(tile_batch, 8)
    tb = max(8, min(tb, _round_up(B, 8)))
    b_pad = _round_up(B, tb)
    n_tiles = b_pad // tb

    x_p = x if b_pad == B else jnp.pad(x, ((0, b_pad - B), (0, 0)))
    # bf16 matmul operands; f32 everywhere else.
    x_bf = x_p.astype(jnp.bfloat16)
    w1_bf = params["w1"].astype(jnp.bfloat16)
    w2_bf = params["w2"].astype(jnp.bfloat16)
    w3_row = params["w3"].reshape(1, H)                    # (1, H) f32

    # ---- Stage 1: Linear1 + ReLU, accumulate BN sum / sumsq over the batch ----
    h1, bn_sum, bn_ssq = pl.pallas_call(
        _make_stage1_kernel(B, b_pad, tb),
        grid=(n_tiles,),
        in_specs=[
            pl.BlockSpec((tb, IN), lambda i: (i, 0)),      # x tile
            pl.BlockSpec((IN, H), lambda i: (0, 0)),       # W1 (resident)
            pl.BlockSpec((1, H), lambda i: (0, 0)),        # b1 (resident)
        ],
        out_specs=(
            pl.BlockSpec((tb, H), lambda i: (i, 0)),       # h1 tile
            pl.BlockSpec((1, H), lambda i: (0, 0)),        # sum   (accumulator)
            pl.BlockSpec((1, H), lambda i: (0, 0)),        # sumsq (accumulator)
        ),
        out_shape=(
            jax.ShapeDtypeStruct((b_pad, H), jnp.float32),
            jax.ShapeDtypeStruct((1, H), jnp.float32),
            jax.ShapeDtypeStruct((1, H), jnp.float32),
        ),
        compiler_params=pltpu.CompilerParams(
            dimension_semantics=("arbitrary",)),           # stats reduction axis
        cost_estimate=pl.CostEstimate(
            flops=2 * b_pad * IN * H + 4 * b_pad * H,
            transcendentals=0,
            bytes_accessed=b_pad * IN * 2 + IN * H * 2 + H * 4
                           + b_pad * H * 4 + 2 * H * 4),
    )(x_bf, w1_bf, params["b1"])

    # ---- Stage 2: BN -> Linear2 + ReLU -> Linear(H,1) + Sigmoid ----
    out = pl.pallas_call(
        _make_stage2_kernel(B),
        grid=(n_tiles,),
        in_specs=[
            pl.BlockSpec((tb, H), lambda i: (i, 0)),       # h1 tile
            pl.BlockSpec((1, H), lambda i: (0, 0)),        # BN sum
            pl.BlockSpec((1, H), lambda i: (0, 0)),        # BN sumsq
            pl.BlockSpec((1, H), lambda i: (0, 0)),        # gamma
            pl.BlockSpec((1, H), lambda i: (0, 0)),        # beta
            pl.BlockSpec((H, H), lambda i: (0, 0)),        # W2 (resident, bf16)
            pl.BlockSpec((1, H), lambda i: (0, 0)),        # b2
            pl.BlockSpec((1, H), lambda i: (0, 0)),        # W3 row
            pl.BlockSpec((1, 1), lambda i: (0, 0)),        # b3
        ],
        out_specs=pl.BlockSpec((tb, 1), lambda i: (i, 0)),
        out_shape=jax.ShapeDtypeStruct((b_pad, 1), jnp.float32),
        compiler_params=pltpu.CompilerParams(
            dimension_semantics=("parallel",)),            # tiles independent now
        cost_estimate=pl.CostEstimate(
            flops=2 * b_pad * H * H + 10 * b_pad * H,
            transcendentals=b_pad + H,
            bytes_accessed=b_pad * H * 4 + 6 * H * 4 + H * H * 2 + 4
                           + b_pad * 4),
    )(h1, bn_sum, bn_ssq, params["gamma"], params["beta"],
      w2_bf, params["b2"], w3_row, params["b3"])

    return out[:B]


def init_params(key, input_size, hidden_dim):
    # Deterministic synthetic init (PyTorch-style uniform(-1/sqrt(fan_in), ...)).
    ks = jax.random.split(key, 6)

    def lin(kw, kb, fan_in, fan_out):
        bound = 1.0 / jnp.sqrt(fan_in)
        w = jax.random.uniform(kw, (fan_in, fan_out), jnp.float32, -bound, bound)
        b = jax.random.uniform(kb, (1, fan_out), jnp.float32, -bound, bound)
        return w, b

    w1, b1 = lin(ks[0], ks[1], input_size, hidden_dim)
    w2, b2 = lin(ks[2], ks[3], hidden_dim, hidden_dim)
    w3, b3 = lin(ks[4], ks[5], hidden_dim, 1)
    return {
        "w1": w1, "b1": b1,
        "gamma": jnp.ones((1, hidden_dim), jnp.float32),   # BatchNorm1d weight
        "beta": jnp.zeros((1, hidden_dim), jnp.float32),   # BatchNorm1d bias
        "w2": w2, "b2": b2,
        "w3": w3, "b3": b3,
    }


def reference_forward(x, p):
    # Pure f32 reference (PyTorch semantics, training-mode BatchNorm1d).
    h1 = jnp.maximum(x @ p["w1"] + p["b1"], 0.0)
    mean = jnp.mean(h1, axis=0, keepdims=True)
    var = jnp.mean((h1 - mean) ** 2, axis=0, keepdims=True)
    h_bn = p["gamma"] * (h1 - mean) / jnp.sqrt(var + BN_EPS) + p["beta"]
    h2 = jnp.maximum(h_bn @ p["w2"] + p["b2"], 0.0)
    return jax.nn.sigmoid(h2 @ p["w3"] + p["b3"])


if __name__ == "__main__":
    INPUT_SIZE, HIDDEN = 32, 128
    key = jax.random.PRNGKey(0)
    kx1, kx2, kp = jax.random.split(key, 3)
    params = init_params(kp, INPUT_SIZE, HIDDEN)

    # bf16 matmul operands (f32 accumulation) => relaxed tolerance vs f32 ref.
    TOL = 2.5e-2

    # Case 1: small single-tile batch.
    B1 = 8
    x1 = jax.random.normal(kx1, (B1, INPUT_SIZE), jnp.float32)
    out1 = jax.block_until_ready(discriminator_forward(x1, params))
    ref1 = reference_forward(x1, params)
    assert out1.shape == (B1, 1)
    assert jnp.allclose(out1, ref1, atol=TOL, rtol=TOL)

    # Case 2: multi-tile batch (exercises the batch grid, the cross-tile
    # BatchNorm statistics accumulation, and the padded-row masking).
    B2 = 40
    x2 = jax.random.normal(kx2, (B2, INPUT_SIZE), jnp.float32)
    out2 = jax.block_until_ready(
        discriminator_forward(x2, params, tile_batch=16))
    ref2 = reference_forward(x2, params)
    assert out2.shape == (B2, 1)
    assert jnp.allclose(out2, ref2, atol=TOL, rtol=TOL)

    print("KERNEL_OK")
</pallas_src>

<mosaic_0001>
module attributes {stable_mosaic.version = 11 : i64} {
  func.func @kernel(%arg0: i32, %arg1: memref<8x32xbf16, #tpu.memory_space<vmem>>, %arg2: memref<32x128xbf16, #tpu.memory_space<vmem>>, %arg3: memref<1x128xf32, #tpu.memory_space<vmem>>, %arg4: memref<8x128xf32, #tpu.memory_space<vmem>>, %arg5: memref<1x128xf32, #tpu.memory_space<vmem>>, %arg6: memref<1x128xf32, #tpu.memory_space<vmem>>) attributes {dimension_semantics = [#tpu.dimension_semantics<arbitrary>], iteration_bounds = array<i64: 1>, scalar_prefetch = 0 : i64, scratch_operands = 0 : i64, tpu.core_type = #tpu.core_type<tc>, window_params = [{transform_indices = @transform_0, window_bounds = array<i64: 8, 32>}, {pipeline_mode = #tpu.pipeline_mode<synchronous>, transform_indices = @transform_1, window_bounds = array<i64: 32, 128>}, {pipeline_mode = #tpu.pipeline_mode<synchronous>, transform_indices = @transform_2, window_bounds = array<i64: 1, 128>}, {transform_indices = @transform_3, window_bounds = array<i64: 8, 128>}, {pipeline_mode = #tpu.pipeline_mode<synchronous>, transform_indices = @transform_4, window_bounds = array<i64: 1, 128>}, {pipeline_mode = #tpu.pipeline_mode<synchronous>, transform_indices = @transform_5, window_bounds = array<i64: 1, 128>}]} {
    %c0_i32 = arith.constant 0 : i32
    %0 = arith.cmpi eq, %arg0, %c0_i32 : i32
    %1 = arith.extui %0 : i1 to i32
    %c0_i32_0 = arith.constant 0 : i32
    %2 = arith.cmpi ne, %1, %c0_i32_0 : i32
    scf.if %2 {
      %cst_19 = arith.constant 0.000000e+00 : f32
      %23 = vector.broadcast %cst_19 : f32 to vector<1x128xf32>
      %c0_20 = arith.constant 0 : index
      %c0_21 = arith.constant 0 : index
      %24 = vector.load %arg5[%c0_20, %c0_21] : memref<1x128xf32, #tpu.memory_space<vmem>>, vector<1x128xf32>
      tpu.vector_store %arg5[%c0_20, %c0_21], %23 {strides = array<i32>} : memref<1x128xf32, #tpu.memory_space<vmem>>, vector<1x128xf32>,
      %cst_22 = arith.constant 0.000000e+00 : f32
      %25 = vector.broadcast %cst_22 : f32 to vector<1x128xf32>
      %c0_23 = arith.constant 0 : index
      %c0_24 = arith.constant 0 : index
      %26 = vector.load %arg6[%c0_23, %c0_24] : memref<1x128xf32, #tpu.memory_space<vmem>>, vector<1x128xf32>
      tpu.vector_store %arg6[%c0_23, %c0_24], %25 {strides = array<i32>} : memref<1x128xf32, #tpu.memory_space<vmem>>, vector<1x128xf32>,
    } else {
    }
    %c0 = arith.constant 0 : index
    %c0_1 = arith.constant 0 : index
    %3 = vector.load %arg1[%c0, %c0_1] : memref<8x32xbf16, #tpu.memory_space<vmem>>, vector<8x32xbf16>
    %c0_2 = arith.constant 0 : index
    %c0_3 = arith.constant 0 : index
    %4 = vector.load %arg2[%c0_2, %c0_3] : memref<32x128xbf16, #tpu.memory_space<vmem>>, vector<32x128xbf16>
    %cst = arith.constant dense<0.000000e+00> : vector<8x128xf32>
    %5 = tpu.matmul %3, %4, %cst {dimension_numbers = #tpu.dot_dimension_numbers<[1], [0], [0], [1], [0, 0, 1, 1], [], []>} : vector<8x32xbf16>, vector<32x128xbf16>, vector<8x128xf32> -> vector<8x128xf32>
    %c0_4 = arith.constant 0 : index
    %c0_5 = arith.constant 0 : index
    %6 = vector.load %arg3[%c0_4, %c0_5] : memref<1x128xf32, #tpu.memory_space<vmem>>, vector<1x128xf32>
    %7 = vector.broadcast %6 : vector<1x128xf32> to vector<8x128xf32>
    %8 = arith.addf %5, %7 : vector<8x128xf32>
    %cst_6 = arith.constant 0.000000e+00 : f32
    %9 = vector.broadcast %cst_6 : f32 to vector<8x128xf32>
    %10 = arith.maximumf %8, %9 : vector<8x128xf32>
    %c0_7 = arith.constant 0 : index
    %c0_8 = arith.constant 0 : index
    %11 = vector.load %arg4[%c0_7, %c0_8] : memref<8x128xf32, #tpu.memory_space<vmem>>, vector<8x128xf32>
    tpu.vector_store %arg4[%c0_7, %c0_8], %10 {strides = array<i32>} : memref<8x128xf32, #tpu.memory_space<vmem>>, vector<8x128xf32>,
    %c0_9 = arith.constant 0 : index
    %c0_10 = arith.constant 0 : index
    %12 = vector.load %arg5[%c0_9, %c0_10] : memref<1x128xf32, #tpu.memory_space<vmem>>, vector<1x128xf32>
    %cst_11 = arith.constant dense<0.000000e+00> : vector<128xf32>
    %13 = vector.multi_reduction <add>, %10, %cst_11 [0] : vector<8x128xf32> to vector<128xf32>
    %14 = vector.shape_cast %13 : vector<128xf32> to vector<1x128xf32>
    %15 = arith.addf %12, %14 : vector<1x128xf32>
    %c0_12 = arith.constant 0 : index
    %c0_13 = arith.constant 0 : index
    %16 = vector.load %arg5[%c0_12, %c0_13] : memref<1x128xf32, #tpu.memory_space<vmem>>, vector<1x128xf32>
    tpu.vector_store %arg5[%c0_12, %c0_13], %15 {strides = array<i32>} : memref<1x128xf32, #tpu.memory_space<vmem>>, vector<1x128xf32>,
    %c0_14 = arith.constant 0 : index
    %c0_15 = arith.constant 0 : index
    %17 = vector.load %arg6[%c0_14, %c0_15] : memref<1x128xf32, #tpu.memory_space<vmem>>, vector<1x128xf32>
    %18 = arith.mulf %10, %10 : vector<8x128xf32>
    %cst_16 = arith.constant dense<0.000000e+00> : vector<128xf32>
    %19 = vector.multi_reduction <add>, %18, %cst_16 [0] : vector<8x128xf32> to vector<128xf32>
    %20 = vector.shape_cast %19 : vector<128xf32> to vector<1x128xf32>
    %21 = arith.addf %17, %20 : vector<1x128xf32>
    %c0_17 = arith.constant 0 : index
    %c0_18 = arith.constant 0 : index
    %22 = vector.load %arg6[%c0_17, %c0_18] : memref<1x128xf32, #tpu.memory_space<vmem>>, vector<1x128xf32>
    tpu.vector_store %arg6[%c0_17, %c0_18], %21 {strides = array<i32>} : memref<1x128xf32, #tpu.memory_space<vmem>>, vector<1x128xf32>,
    return
  }
  func.func @transform_0(%arg0: i32) -> (i32, i32) {
    %c0_i32 = arith.constant 0 : i32
    %c0_i32_0 = arith.constant 0 : i32
    return %arg0, %c0_i32 : i32, i32
  }
  func.func @transform_1(%arg0: i32) -> (i32, i32) {
    %c0_i32 = arith.constant 0 : i32
    %c0_i32_0 = arith.constant 0 : i32
    %c0_i32_1 = arith.constant 0 : i32
    return %c0_i32, %c0_i32_0 : i32, i32
  }
  func.func @transform_2(%arg0: i32) -> (i32, i32) {
    %c0_i32 = arith.constant 0 : i32
    %c0_i32_0 = arith.constant 0 : i32
    %c0_i32_1 = arith.constant 0 : i32
    return %c0_i32, %c0_i32_0 : i32, i32
  }
  func.func @transform_3(%arg0: i32) -> (i32, i32) {
    %c0_i32 = arith.constant 0 : i32
    %c0_i32_0 = arith.constant 0 : i32
    return %arg0, %c0_i32 : i32, i32
  }
  func.func @transform_4(%arg0: i32) -> (i32, i32) {
    %c0_i32 = arith.constant 0 : i32
    %c0_i32_0 = arith.constant 0 : i32
    %c0_i32_1 = arith.constant 0 : i32
    return %c0_i32, %c0_i32_0 : i32, i32
  }
  func.func @transform_5(%arg0: i32) -> (i32, i32) {
    %c0_i32 = arith.constant 0 : i32
    %c0_i32_0 = arith.constant 0 : i32
    %c0_i32_1 = arith.constant 0 : i32
    return %c0_i32, %c0_i32_0 : i32, i32
  }
}

</mosaic_0001>

<llo_original>
// kernel: tpu_custom_call.1
$region0: #{tpu_custom_call.1}
  #allocation0 [shape = 'u32[]', space=smem, size = 0x4, offset = 0x4, fixed_abs, tag = 'smem constant byte address 0x4 - core index']
  #allocation1 [shape = 'u32[144,128]{1,0:T(1,128)}', space=vmem, size = 0x12000, scoped, tag = 'internal scratch']
  %s0 = inlined_call_operand.hbm [shape: bf16[8,32], index: 0, kind: input, shape index: {}]
  %s1 = inlined_call_operand.hbm [shape: bf16[32,128], index: 1, kind: input, shape index: {}]
  %s2 = inlined_call_operand.vmem [shape: f32[1,128], index: 2, kind: input, shape index: {}]
  %s3 = inlined_call_operand.hbm [shape: f32[8,128], index: 3, kind: output, shape index: {0}]
  %s4 = inlined_call_operand.hbm [shape: f32[1,128], index: 4, kind: output, shape index: {1}]
  %s5 = inlined_call_operand.hbm [shape: f32[1,128], index: 5, kind: output, shape index: {2}]
  %6 = xla_tuple %s3, %s4, %s5
  %s7 = sld [smem:[#allocation0]]
  $region50: #{tpu_custom_call.1} parent=0
    _
  %s9 = ssub.s32 1, %s7
  %s10 = scalar_select 0, %s9, %s7
  $region1: #{tpu_custom_call.1} parent=0
    #allocation2 [shape = 'u8[2048]{0}', space=vmem, size = 0x800, scoped, tag = 'input window, operand 0, single buffered']
    #allocation3 [shape = 's32[1]{0}', space=sflag, size = 0x4, scoped, tag = 'scoped memory for tpu_custom_call.1']
    #allocation4 [shape = 's32[1]{0}', space=sflag, size = 0x4, scoped, tag = 'scoped memory for tpu_custom_call.1']
    #allocation5 [shape = 'u8[8192]{0}', space=vmem, size = 0x2000, scoped, tag = 'input window, operand 1, single buffered']
    #allocation6 [shape = 's32[1]{0}', space=sflag, size = 0x4, scoped, tag = 'scoped memory for tpu_custom_call.1']
    #allocation7 [shape = 'u8[4096]{0}', space=vmem, size = 0x1000, scoped, tag = 'output window, operand 0, single buffered']
    #allocation8 [shape = 'u8[512]{0}', space=vmem, size = 0x400, scoped, tag = 'output window, operand 1, single buffered']
    #allocation9 [shape = 's32[1]{0}', space=sflag, size = 0x4, scoped, tag = 'scoped memory for tpu_custom_call.1']
    #allocation10 [shape = 'u8[512]{0}', space=vmem, size = 0x400, scoped, tag = 'output window, operand 2, single buffered']
    %11 = vsyncpa [#allocation3], 0
    %12 = vsyncpa [#allocation6], 0
    %13 = vsyncpa [#allocation4], 0
    %14 = vsyncpa [#allocation9], 0
    // Predicated region
    $region2: #{tpu_custom_call.1} parent=1 // pred_check
      _
    $region3: #{tpu_custom_call.1} parent=1 // pred_check_branch
      %16 = sbr.rel (0) target = $region5
    $region4: #{tpu_custom_call.1} parent=1 // pred_region
      %s18 = ssub.s32 64, 64
      %19 = vsyncadd [#allocation3], %s18
      %s21 = sshll.u32 [#allocation2], 4
      %s22 = int_to_ptr.vmem [resolvable:$true] %s21
      %24 = dma.hbm_to_vmem [thread:$0]  %s0, 64, %s22, [#allocation3]
    $region5: #{tpu_custom_call.1} parent=1 // pred_fallthru
      _
    // Predicated region
    $region6: #{tpu_custom_call.1} parent=1 // pred_check
      _
    $region7: #{tpu_custom_call.1} parent=1 // pred_check_branch
      %26 = sbr.rel (0) target = $region9
    $region8: #{tpu_custom_call.1} parent=1 // pred_region
      %s28 = ssub.s32 256, 256
      %29 = vsyncadd [#allocation6], %s28
      %s30 = sshll.u32 [#allocation5], 4
      %s31 = int_to_ptr.vmem [resolvable:$true] %s30
      %36 = dma.hbm_to_vmem [thread:$0]  %s1, 256, %s31, [#allocation6], 64, 64, 4
    $region9: #{tpu_custom_call.1} parent=1 // pred_fallthru
      _
    // Predicated region
    $region10: #{tpu_custom_call.1} parent=1 // pred_check
      _
    $region11: #{tpu_custom_call.1} parent=1 // pred_check_branch
      %38 = sbr.rel (0) target = $region13
    $region12: #{tpu_custom_call.1} parent=1 // pred_region
      _
    $region13: #{tpu_custom_call.1} parent=1 // pred_fallthru
      _
    // Predicated region
    $region14: #{tpu_custom_call.1} parent=1 // pred_check
      _
    $region15: #{tpu_custom_call.1} parent=1 // pred_check_branch
      %40 = sbr.rel (0) target = $region17
    $region16: #{tpu_custom_call.1} parent=1 // pred_region
      %41 = dma.done [#allocation3], 64
    $region17: #{tpu_custom_call.1} parent=1 // pred_fallthru
      _
    // Predicated region
    $region18: #{tpu_custom_call.1} parent=1 // pred_check
      _
    $region19: #{tpu_custom_call.1} parent=1 // pred_check_branch
      %43 = sbr.rel (0) target = $region21
    $region20: #{tpu_custom_call.1} parent=1 // pred_region
      %44 = dma.done [#allocation6], 256
    $region21: #{tpu_custom_call.1} parent=1 // pred_fallthru
      _
    %p46 = scmp.eq.s32.totalorder 0, 0
    // Predicated region
    $region22: #{tpu_custom_call.1} parent=1 // pred_check
      %p47 = pneg %p46
    $region23: #{tpu_custom_call.1} parent=1 // pred_check_branch
      %49 = sbr.rel (%p47) target = $region25
    $region24: #{tpu_custom_call.1} parent=1 // pred_region
      %50 = vst [vmem:[#allocation8] sm:$0x1] 0.0
      %51 = vst [vmem:[#allocation10] sm:$0x1] 0.0
    $region25: #{tpu_custom_call.1} parent=1 // pred_fallthru
      _
    %v52 = vld [vmem:[#allocation2] sm:$0xf]
    %v53 = vld [vmem:[#allocation5] sm:$0xf]
    %v54 = vld [vmem:[#allocation5 + $0x4] sm:$0xf]
    %v55 = vld [vmem:[#allocation5 + $0x8] sm:$0xf]
    %v56 = vld [vmem:[#allocation5 + $0xc] sm:$0xf]
    %v57 = vld [vmem:[%s2] sm:$0x1]
    %v59 = vlaneseq
    %v60 = vshrl.u32 %v59, 7
    %v61 = vsub.s32 0, %v60
    %v62 = vrot.slane %v57, %v61
    %v68 = vunpack.c.l.b16 %v53
    %v69 = vunpack.c.l.b16 %v54
    %v70 = vunpack.c.l.b16 %v55
    %v71 = vunpack.c.l.b16 %v56
    %v72 = vpack.c.b16 %v69, %v68
    %v73 = vpack.c.b16 %v71, %v70
    %vm76 = vcmask 261120
    %v78 = vsel %vm76, %v52, 0
    %80 = vmatprep.subr.bf16.mxu0 0
    %81 = vmatpush1.bf16.msra.mxu0 %v72
    %82 = vmatprep.subr.bf16.mxu0 0
    %83 = vmatpush1.bf16.msra.mxu0 %v73
    %84 = vmatprep.subr.bf16.mxu0 0
    %85 = vmatpush1.bf16.msra.mxu0 0
    %86 = vmatprep.subr.bf16.mxu0 0
    %87 = vmatpush1.bf16.msra.mxu0 0
    %88 = vmatprep.subr.bf16.mxu0 0
    %89 = vmatpush1.bf16.msra.mxu0 0
    %90 = vmatprep.subr.bf16.mxu0 0
    %91 = vmatpush1.bf16.msra.mxu0 0
    %92 = vmatprep.subr.bf16.mxu0 0
    %93 = vmatpush1.bf16.msra.mxu0 0
    %94 = vmatprep.subr.bf16.mxu0 0
    %95 = vmatpush1.bf16.msra.mxu0 0
    %96 = vmatprep.subr.bf16.mxu0 0
    %97 = vmatpush1.bf16.msra.mxu0 0
    %98 = vmatprep.subr.bf16.mxu0 0
    %99 = vmatpush1.bf16.msra.mxu0 0
    %100 = vmatprep.subr.bf16.mxu0 0
    %101 = vmatpush1.bf16.msra.mxu0 0
    %102 = vmatprep.subr.bf16.mxu0 0
    %103 = vmatpush1.bf16.msra.mxu0 0
    %104 = vmatprep.subr.bf16.mxu0 0
    %105 = vmatpush1.bf16.msra.mxu0 0
    %106 = vmatprep.subr.bf16.mxu0 0
    %107 = vmatpush1.bf16.msra.mxu0 0
    %108 = vmatprep.subr.bf16.mxu0 0
    %109 = vmatpush1.bf16.msra.mxu0 0
    %110 = vmatprep.subr.bf16.mxu0 0
    %111 = vmatpush1.bf16.msra.mxu0 0
    %112 = vmatprep.mubr.bf16.mxu0 0
    %113 = vmatmul.mubr.bf16.gmra.mrb[0].mxu0 %v78
    %v114 = vpop.f32.mrb[0].mxu0
    %v115 = vadd.f32 %v62, %v114
    %v116 = vpop.f32.mrb[0].mxu0
    %v117 = vpop.f32.mrb[0].mxu0
    %v118 = vpop.f32.mrb[0].mxu0
    %119 = vdwg.mxu0
    %v120 = vmax.f32 %v115, 0.0
    %121 = vst [vmem:[#allocation7] sm:$0xff] %v120
    %v122 = vld [vmem:[#allocation8] sm:$0x1]
    %v123 = vrot.slane %v120, 4
    %v124 = vadd.f32 %v120, %v123
    %v125 = vrot.slane %v124, 2
    %v126 = vadd.f32 %v124, %v125
    %v127 = vrot.slane %v126, 1
    %v128 = vadd.f32 %v126, %v127
    %v129 = vadd.f32 %v122, %v128
    %130 = vst [vmem:[#allocation8] sm:$0x1] %v129
    %v131 = vld [vmem:[#allocation10] sm:$0x1]
    %v132 = vmul.f32 %v120, %v120
    %v133 = vrot.slane %v132, 4
    %v134 = vadd.f32 %v132, %v133
    %v135 = vrot.slane %v134, 2
    %v136 = vadd.f32 %v134, %v135
    %v137 = vrot.slane %v136, 1
    %v138 = vadd.f32 %v136, %v137
    %v139 = vadd.f32 %v131, %v138
    %140 = vst [vmem:[#allocation10] sm:$0x1] %v139
    // Predicated region
    $region26: #{tpu_custom_call.1} parent=1 // pred_check
      _
    $region27: #{tpu_custom_call.1} parent=1 // pred_check_branch
      %142 = sbr.rel (0) target = $region29
    $region28: #{tpu_custom_call.1} parent=1 // pred_region
      %s144 = ssub.s32 128, 128
      %145 = vsyncadd [#allocation4], %s144
      %s147 = sshll.u32 [#allocation7], 4
      %s148 = int_to_ptr.vmem [resolvable:$true] %s147
      %150 = dma.vmem_to_hbm [thread:$0]  %s148, 128, %s3, [#allocation4]
    $region29: #{tpu_custom_call.1} parent=1 // pred_fallthru
      _
    // Predicated region
    $region30: #{tpu_custom_call.1} parent=1 // pred_check
      _
    $region31: #{tpu_custom_call.1} parent=1 // pred_check_branch
      %152 = sbr.rel (0) target = $region33
    $region32: #{tpu_custom_call.1} parent=1 // pred_region
      %s154 = ssub.s32 16, 16
      %155 = vsyncadd [#allocation9], %s154
      %s157 = sshll.u32 [#allocation8], 4
      %s158 = int_to_ptr.vmem [resolvable:$true] %s157
      %160 = dma.vmem_to_hbm [thread:$0]  %s158, 16, %s4, [#allocation9]
    $region33: #{tpu_custom_call.1} parent=1 // pred_fallthru
      _
    // Predicated region
    $region34: #{tpu_custom_call.1} parent=1 // pred_check
      _
    $region35: #{tpu_custom_call.1} parent=1 // pred_check_branch
      %162 = sbr.rel (0) target = $region37
    $region36: #{tpu_custom_call.1} parent=1 // pred_region
      %s164 = ssub.s32 16, 16
      %165 = vsyncadd [#allocation9], %s164
      %s167 = sshll.u32 [#allocation10], 4
      %s168 = int_to_ptr.vmem [resolvable:$true] %s167
      %170 = dma.vmem_to_hbm [thread:$0]  %s168, 16, %s5, [#allocation9]
    $region37: #{tpu_custom_call.1} parent=1 // pred_fallthru
      _
    // Predicated region
    $region38: #{tpu_custom_call.1} parent=1 // pred_check
      _
    $region39: #{tpu_custom_call.1} parent=1 // pred_check_branch
      %172 = sbr.rel (0) target = $region41
    $region40: #{tpu_custom_call.1} parent=1 // pred_region
      %173 = dma.done [#allocation4], 128
    $region41: #{tpu_custom_call.1} parent=1 // pred_fallthru
      _
    // Predicated region
    $region42: #{tpu_custom_call.1} parent=1 // pred_check
      _
    $region43: #{tpu_custom_call.1} parent=1 // pred_check_branch
      %175 = sbr.rel (0) target = $region45
    $region44: #{tpu_custom_call.1} parent=1 // pred_region
      %176 = dma.done [#allocation9], 16
    $region45: #{tpu_custom_call.1} parent=1 // pred_fallthru
      _
    // Predicated region
    $region46: #{tpu_custom_call.1} parent=1 // pred_check
      _
    $region47: #{tpu_custom_call.1} parent=1 // pred_check_branch
      %178 = sbr.rel (0) target = $region49
    $region48: #{tpu_custom_call.1} parent=1 // pred_region
      %179 = dma.done [#allocation9], 16
    $region49: #{tpu_custom_call.1} parent=1 // pred_fallthru
      _
    %180 = vsyncpa [#allocation3], 1
    %181 = vsyncpa [#allocation6], 1
    %182 = vsyncpa [#allocation4], 1
    %183 = vsyncpa [#allocation9], 1

</llo_original>
